<compile_context>
chip_gen: v5e
topology: v5e:2x2
jax: 0.10.0
libtpu: 0.0.40
codegen_flags: <defaults>
</compile_context>

<pallas_src>
import functools

import jax
import jax.numpy as jnp
from jax.experimental import pallas as pl
from jax.experimental.pallas import tpu as pltpu


_WIDTH = 128          # lane width: every layer is zero-padded to 128 columns
_NUM_LAYERS = 4       # fc1, fc2, fused-head-1, fused-head-2


def _round_up(x, m):
    return (x + m - 1) // m * m


def _dueling_kernel(x_ref, w_ref, b_ref, q_ref, asum_ref, *, tile_b, batch):
    """One batch tile: four resident (128,128) matmuls + fused dueling head."""
    i = pl.program_id(0)

    h = x_ref[...]                                      # (tile_b, 128) compute dtype
    z = None
    for l in range(_NUM_LAYERS):
        # Static, (8,128)-tile-aligned view into the resident weight slab.
        w_l = w_ref[l * _WIDTH:(l + 1) * _WIDTH, :]
        z = jnp.dot(h, w_l, preferred_element_type=jnp.float32) + b_ref[l:l + 1, :]
        if l < _NUM_LAYERS - 1:                         # ReLU stays in f32 on the VPU
            h = jnp.maximum(z, 0.0).astype(x_ref.dtype)

    va = z                                              # f32: col 0 = V, cols 1..A = advantages
    v = va[:, 0:1]
    # Lane-dense store: q = v + a lives in columns 1..A of a full 128-lane slab.
    q_ref[...] = va + v

    # Per-tile masked column-sums of the advantage slab (padding rows excluded);
    # the global torch.mean(a) is finalized in the wrapper.
    row = i * tile_b + jax.lax.broadcasted_iota(jnp.int32, (tile_b, 1), 0)
    valid = (row < batch).astype(jnp.float32)
    asum_ref[...] = jnp.sum(va * valid, axis=0, keepdims=True)


def pack_params(params, state_size, action_size):
    """Fuse the value/advantage heads and pack everything into two VMEM slabs.

    Returns (w_slab, b_slab, action_size):
      w_slab: (4*128, 128) f32 -- [fc1 | fc2 | [vfc1|afc1] | blockdiag(vfc2, afc2)]
      b_slab: (4, 128)     f32 -- matching biases, zero-padded per row.
    """
    (w1, b1, w2, b2, wv1, bv1, wv2, bv2, wa1, ba1, wa2, ba2) = [
        jnp.asarray(p, jnp.float32) for p in params
    ]
    fc1, fc2 = w1.shape[1], w2.shape[1]
    nv, na = wv1.shape[1], wa1.shape[1]
    assert state_size <= _WIDTH and fc1 <= _WIDTH and fc2 <= _WIDTH
    assert nv + na <= _WIDTH and 1 + action_size <= _WIDTH

    def pad_w(w):
        out = jnp.zeros((_WIDTH, _WIDTH), jnp.float32)
        return out.at[:w.shape[0], :w.shape[1]].set(w)

    def pad_b(b):
        b = b.reshape(-1)
        return jnp.zeros((_WIDTH,), jnp.float32).at[:b.shape[0]].set(b)

    # Fused head, layer 1: h2 @ [wv1 | wa1]  -> (B, nv+na)
    wh1 = jnp.concatenate([wv1, wa1], axis=1)
    bh1 = jnp.concatenate([bv1.reshape(-1), ba1.reshape(-1)])
    # Fused head, layer 2: block-diagonal -> (B, 1+A): col 0 = V, cols 1..A = advantages.
    wh2 = jnp.zeros((nv + na, 1 + action_size), jnp.float32)
    wh2 = wh2.at[:nv, 0:1].set(wv2)
    wh2 = wh2.at[nv:, 1:1 + action_size].set(wa2)
    bh2 = jnp.concatenate([bv2.reshape(-1), ba2.reshape(-1)])

    w_slab = jnp.concatenate([pad_w(w1), pad_w(w2), pad_w(wh1), pad_w(wh2)], axis=0)
    b_slab = jnp.stack([pad_b(b1), pad_b(b2), pad_b(bh1), pad_b(bh2)], axis=0)
    return w_slab, b_slab, int(action_size)


def dueling_q_forward(x, packed, *, use_bf16=True, block_rows=512):
    """Dueling Q-network forward. `packed` comes from pack_params(...)."""
    w_slab, b_slab, action_size = packed
    batch, state_size = x.shape

    cdt = jnp.bfloat16 if use_bf16 else jnp.float32
    tile_b = min(block_rows, _round_up(batch, 8))
    b_pad = _round_up(batch, tile_b)
    num_tiles = b_pad // tile_b

    # Lane-dense, zero-padded input slab in the MXU compute dtype.
    x_pad = jnp.zeros((b_pad, _WIDTH), cdt).at[:batch, :state_size].set(x.astype(cdt))
    w_in = w_slab.astype(cdt)

    kernel = functools.partial(_dueling_kernel, tile_b=tile_b, batch=batch)

    q_slab, a_sums = pl.pallas_call(
        kernel,
        grid=(num_tiles,),
        in_specs=[
            pl.BlockSpec((tile_b, _WIDTH), lambda i: (i, 0)),                 # x tile
            pl.BlockSpec((_NUM_LAYERS * _WIDTH, _WIDTH), lambda i: (0, 0)),   # weights (resident)
            pl.BlockSpec((_NUM_LAYERS, _WIDTH), lambda i: (0, 0)),            # biases (resident)
        ],
        out_specs=[
            pl.BlockSpec((tile_b, _WIDTH), lambda i: (i, 0)),                 # lane-dense q slab
            pl.BlockSpec((None, 1, _WIDTH), lambda i: (i, 0, 0)),             # per-tile a column-sums
        ],
        out_shape=[
            jax.ShapeDtypeStruct((b_pad, _WIDTH), jnp.float32),
            jax.ShapeDtypeStruct((num_tiles, 1, _WIDTH), jnp.float32),
        ],
        compiler_params=pltpu.CompilerParams(dimension_semantics=("parallel",)),
    )(x_pad, w_in, b_slab)

    # Finalize the global torch.mean(a) (over batch AND actions) and the combine.
    mean_a = jnp.sum(a_sums[:, 0, 1:1 + action_size]) / (batch * action_size)
    return q_slab[:batch, 1:1 + action_size] - mean_a


def init_params(key, state_size, action_size,
                fc1_units=64, fc2_units=64,
                vfc1_units=24, vfc2_units=24,
                afc1_units=24, afc2_units=24):
    """PyTorch-nn.Linear-style init: U(-1/sqrt(fan_in), 1/sqrt(fan_in))."""
    # vfc2_units / afc2_units exist in the torch __init__ signature but are
    # unused by its layer definitions; mirrored here for fidelity.
    del vfc2_units, afc2_units

    def linear(k, fan_in, fan_out):
        kw, kb = jax.random.split(k)
        bound = 1.0 / float(fan_in) ** 0.5
        w = jax.random.uniform(kw, (fan_in, fan_out), jnp.float32, -bound, bound)
        b = jax.random.uniform(kb, (fan_out,), jnp.float32, -bound, bound)
        return w, b

    keys = jax.random.split(key, 6)
    w1, b1 = linear(keys[0], state_size, fc1_units)
    w2, b2 = linear(keys[1], fc1_units, fc2_units)
    wv1, bv1 = linear(keys[2], fc2_units, vfc1_units)
    wv2, bv2 = linear(keys[3], vfc1_units, 1)
    wa1, ba1 = linear(keys[4], fc2_units, afc1_units)
    wa2, ba2 = linear(keys[5], afc1_units, action_size)
    return (w1, b1, w2, b2, wv1, bv1, wv2, bv2, wa1, ba1, wa2, ba2)


def reference_forward(x, params, use_bf16=False):
    """Pure-JAX mirror of the torch forward (optionally bf16 at the dot inputs)."""
    (w1, b1, w2, b2, wv1, bv1, wv2, bv2, wa1, ba1, wa2, ba2) = params
    cdt = jnp.bfloat16 if use_bf16 else jnp.float32

    def lin(h, w, b):
        return jnp.dot(h.astype(cdt), w.astype(cdt),
                       preferred_element_type=jnp.float32) + b

    h = jax.nn.relu(lin(x, w1, b1))
    h = jax.nn.relu(lin(h, w2, b2))
    v = lin(jax.nn.relu(lin(h, wv1, bv1)), wv2, bv2)
    a = lin(jax.nn.relu(lin(h, wa1, ba1)), wa2, ba2)
    return v + a - jnp.mean(a)


if __name__ == "__main__":
    state_size = 8
    action_size = 4
    batch = 2

    key = jax.random.PRNGKey(0)
    k_params, k_x = jax.random.split(key)
    params = init_params(k_params, state_size, action_size)
    packed = pack_params(params, state_size, action_size)

    x = jax.random.normal(k_x, (batch, state_size), jnp.float32)

    # Default (bf16-at-MXU) path vs. a bf16-mirrored reference.
    q_bf16 = jax.block_until_ready(dueling_q_forward(x, packed, use_bf16=True))
    ref_bf16 = reference_forward(x, params, use_bf16=True)
    assert q_bf16.shape == (batch, action_size)
    assert jnp.allclose(q_bf16, ref_bf16, atol=1e-2, rtol=1e-2), (q_bf16, ref_bf16)

    # Full-f32 path sanity check against the f32 reference.
    q_f32 = jax.block_until_ready(dueling_q_forward(x, packed, use_bf16=False))
    ref_f32 = reference_forward(x, params, use_bf16=False)
    assert jnp.allclose(q_f32, ref_f32, atol=5e-2, rtol=5e-2), (q_f32, ref_f32)

    # Larger batch exercising the multi-tile grid + padded-row masking path.
    x_big = jax.random.normal(k_x, (1000, state_size), jnp.float32)
    q_big = jax.block_until_ready(
        dueling_q_forward(x_big, packed, use_bf16=True, block_rows=256))
    ref_big = reference_forward(x_big, params, use_bf16=True)
    assert q_big.shape == (1000, action_size)
    assert jnp.allclose(q_big, ref_big, atol=1e-2, rtol=1e-2)

    print("KERNEL_OK")
</pallas_src>

<mosaic_0001>
module attributes {stable_mosaic.version = 11 : i64} {
  func.func @_dueling_kernel(%arg0: i32, %arg1: memref<8x128xbf16, #tpu.memory_space<vmem>>, %arg2: memref<512x128xbf16, #tpu.memory_space<vmem>>, %arg3: memref<4x128xf32, #tpu.memory_space<vmem>>, %arg4: memref<8x128xf32, #tpu.memory_space<vmem>>, %arg5: memref<1x1x128xf32, #tpu.memory_space<vmem>>) attributes {dimension_semantics = [#tpu.dimension_semantics<parallel>], iteration_bounds = array<i64: 1>, scalar_prefetch = 0 : i64, scratch_operands = 0 : i64, tpu.core_type = #tpu.core_type<tc>, window_params = [{transform_indices = @transform_0, window_bounds = array<i64: 8, 128>}, {pipeline_mode = #tpu.pipeline_mode<synchronous>, transform_indices = @transform_1, window_bounds = array<i64: 512, 128>}, {pipeline_mode = #tpu.pipeline_mode<synchronous>, transform_indices = @transform_2, window_bounds = array<i64: 4, 128>}, {transform_indices = @transform_3, window_bounds = array<i64: 8, 128>}, {transform_indices = @transform_4, window_bounds = array<i64: 1, 1, 128>}]} {
    %c0 = arith.constant 0 : index
    %c0_0 = arith.constant 0 : index
    %0 = vector.load %arg1[%c0, %c0_0] : memref<8x128xbf16, #tpu.memory_space<vmem>>, vector<8x128xbf16>
    %c0_1 = arith.constant 0 : index
    %c0_2 = arith.constant 0 : index
    %1 = vector.load %arg2[%c0_1, %c0_2] : memref<512x128xbf16, #tpu.memory_space<vmem>>, vector<128x128xbf16>
    %cst = arith.constant dense<0.000000e+00> : vector<8x128xf32>
    %2 = tpu.matmul %0, %1, %cst {dimension_numbers = #tpu.dot_dimension_numbers<[1], [0], [0], [1], [0, 0, 1, 1], [], []>} : vector<8x128xbf16>, vector<128x128xbf16>, vector<8x128xf32> -> vector<8x128xf32>
    %c0_3 = arith.constant 0 : index
    %c0_4 = arith.constant 0 : index
    %3 = vector.load %arg3[%c0_3, %c0_4] : memref<4x128xf32, #tpu.memory_space<vmem>>, vector<1x128xf32>
    %4 = vector.broadcast %3 : vector<1x128xf32> to vector<8x128xf32>
    %5 = arith.addf %2, %4 : vector<8x128xf32>
    %cst_5 = arith.constant 0.000000e+00 : f32
    %6 = vector.broadcast %cst_5 : f32 to vector<8x128xf32>
    %7 = arith.maximumf %5, %6 : vector<8x128xf32>
    %8 = arith.truncf %7 : vector<8x128xf32> to vector<8x128xbf16>
    %c128 = arith.constant 128 : index
    %c0_6 = arith.constant 0 : index
    %9 = vector.load %arg2[%c128, %c0_6] : memref<512x128xbf16, #tpu.memory_space<vmem>>, vector<128x128xbf16>
    %cst_7 = arith.constant dense<0.000000e+00> : vector<8x128xf32>
    %10 = tpu.matmul %8, %9, %cst_7 {dimension_numbers = #tpu.dot_dimension_numbers<[1], [0], [0], [1], [0, 0, 1, 1], [], []>} : vector<8x128xbf16>, vector<128x128xbf16>, vector<8x128xf32> -> vector<8x128xf32>
    %c1 = arith.constant 1 : index
    %c0_8 = arith.constant 0 : index
    %11 = vector.load %arg3[%c1, %c0_8] : memref<4x128xf32, #tpu.memory_space<vmem>>, vector<1x128xf32>
    %12 = vector.broadcast %11 : vector<1x128xf32> to vector<8x128xf32>
    %13 = arith.addf %10, %12 : vector<8x128xf32>
    %cst_9 = arith.constant 0.000000e+00 : f32
    %14 = vector.broadcast %cst_9 : f32 to vector<8x128xf32>
    %15 = arith.maximumf %13, %14 : vector<8x128xf32>
    %16 = arith.truncf %15 : vector<8x128xf32> to vector<8x128xbf16>
    %c256 = arith.constant 256 : index
    %c0_10 = arith.constant 0 : index
    %17 = vector.load %arg2[%c256, %c0_10] : memref<512x128xbf16, #tpu.memory_space<vmem>>, vector<128x128xbf16>
    %cst_11 = arith.constant dense<0.000000e+00> : vector<8x128xf32>
    %18 = tpu.matmul %16, %17, %cst_11 {dimension_numbers = #tpu.dot_dimension_numbers<[1], [0], [0], [1], [0, 0, 1, 1], [], []>} : vector<8x128xbf16>, vector<128x128xbf16>, vector<8x128xf32> -> vector<8x128xf32>
    %c2 = arith.constant 2 : index
    %c0_12 = arith.constant 0 : index
    %19 = vector.load %arg3[%c2, %c0_12] : memref<4x128xf32, #tpu.memory_space<vmem>>, vector<1x128xf32>
    %20 = vector.broadcast %19 : vector<1x128xf32> to vector<8x128xf32>
    %21 = arith.addf %18, %20 : vector<8x128xf32>
    %cst_13 = arith.constant 0.000000e+00 : f32
    %22 = vector.broadcast %cst_13 : f32 to vector<8x128xf32>
    %23 = arith.maximumf %21, %22 : vector<8x128xf32>
    %24 = arith.truncf %23 : vector<8x128xf32> to vector<8x128xbf16>
    %c384 = arith.constant 384 : index
    %c0_14 = arith.constant 0 : index
    %25 = vector.load %arg2[%c384, %c0_14] : memref<512x128xbf16, #tpu.memory_space<vmem>>, vector<128x128xbf16>
    %cst_15 = arith.constant dense<0.000000e+00> : vector<8x128xf32>
    %26 = tpu.matmul %24, %25, %cst_15 {dimension_numbers = #tpu.dot_dimension_numbers<[1], [0], [0], [1], [0, 0, 1, 1], [], []>} : vector<8x128xbf16>, vector<128x128xbf16>, vector<8x128xf32> -> vector<8x128xf32>
    %c3 = arith.constant 3 : index
    %c0_16 = arith.constant 0 : index
    %27 = vector.load %arg3[%c3, %c0_16] : memref<4x128xf32, #tpu.memory_space<vmem>>, vector<1x128xf32>
    %28 = vector.broadcast %27 : vector<1x128xf32> to vector<8x128xf32>
    %29 = arith.addf %26, %28 : vector<8x128xf32>
    %30 = vector.extract_strided_slice %29 {offsets = [0, 0], sizes = [8, 1], strides = [1, 1]} : vector<8x128xf32> to vector<8x1xf32>
    %31 = vector.broadcast %30 : vector<8x1xf32> to vector<8x128xf32>
    %32 = arith.addf %29, %31 : vector<8x128xf32>
    %c0_17 = arith.constant 0 : index
    %c0_18 = arith.constant 0 : index
    %33 = vector.load %arg4[%c0_17, %c0_18] : memref<8x128xf32, #tpu.memory_space<vmem>>, vector<8x128xf32>
    tpu.vector_store %arg4[%c0_17, %c0_18], %32 {strides = array<i32>} : memref<8x128xf32, #tpu.memory_space<vmem>>, vector<8x128xf32>,
    %c8_i32 = arith.constant 8 : i32
    %34 = arith.muli %arg0, %c8_i32 : i32
    %35 = tpu.iota {dimensions = array<i32: 0>} : vector<8x1xi32>
    %36 = vector.broadcast %34 : i32 to vector<8x1xi32>
    %37 = arith.addi %36, %35 : vector<8x1xi32>
    %c2_i32 = arith.constant 2 : i32
    %38 = vector.broadcast %c2_i32 : i32 to vector<8x1xi32>
    %39 = arith.cmpi slt, %37, %38 : vector<8x1xi32>
    %40 = arith.extui %39 : vector<8x1xi1> to vector<8x1xi32>
    %41 = arith.sitofp %40 : vector<8x1xi32> to vector<8x1xf32>
    %42 = vector.broadcast %41 : vector<8x1xf32> to vector<8x128xf32>
    %43 = arith.mulf %29, %42 : vector<8x128xf32>
    %cst_19 = arith.constant dense<0.000000e+00> : vector<128xf32>
    %44 = vector.multi_reduction <add>, %43, %cst_19 [0] : vector<8x128xf32> to vector<128xf32>
    %45 = vector.shape_cast %44 : vector<128xf32> to vector<1x128xf32>
    %c0_20 = arith.constant 0 : index
    %c0_21 = arith.constant 0 : index
    %c0_22 = arith.constant 0 : index
    %46 = vector.load %arg5[%c0_20, %c0_21, %c0_22] : memref<1x1x128xf32, #tpu.memory_space<vmem>>, vector<1x1x128xf32>
    %47 = vector.shape_cast %46 : vector<1x1x128xf32> to vector<1x128xf32>
    %48 = vector.shape_cast %45 : vector<1x128xf32> to vector<1x1x128xf32>
    tpu.vector_store %arg5[%c0_20, %c0_21, %c0_22], %48 {strides = array<i32>} : memref<1x1x128xf32, #tpu.memory_space<vmem>>, vector<1x1x128xf32>,
    return
  }
  func.func @transform_0(%arg0: i32) -> (i32, i32) {
    %c0_i32 = arith.constant 0 : i32
    %c0_i32_0 = arith.constant 0 : i32
    return %arg0, %c0_i32 : i32, i32
  }
  func.func @transform_1(%arg0: i32) -> (i32, i32) {
    %c0_i32 = arith.constant 0 : i32
    %c0_i32_0 = arith.constant 0 : i32
    %c0_i32_1 = arith.constant 0 : i32
    return %c0_i32, %c0_i32_0 : i32, i32
  }
  func.func @transform_2(%arg0: i32) -> (i32, i32) {
    %c0_i32 = arith.constant 0 : i32
    %c0_i32_0 = arith.constant 0 : i32
    %c0_i32_1 = arith.constant 0 : i32
    return %c0_i32, %c0_i32_0 : i32, i32
  }
  func.func @transform_3(%arg0: i32) -> (i32, i32) {
    %c0_i32 = arith.constant 0 : i32
    %c0_i32_0 = arith.constant 0 : i32
    return %arg0, %c0_i32 : i32, i32
  }
  func.func @transform_4(%arg0: i32) -> (i32, i32, i32) {
    %c0_i32 = arith.constant 0 : i32
    %c0_i32_0 = arith.constant 0 : i32
    %c0_i32_1 = arith.constant 0 : i32
    return %arg0, %c0_i32, %c0_i32_0 : i32, i32, i32
  }
}

</mosaic_0001>

<llo_original>
// kernel: tpu_custom_call.1
$region0: #{tpu_custom_call.1}
  #allocation0 [shape = 'u32[]', space=smem, size = 0x4, offset = 0x4, fixed_abs, tag = 'smem constant byte address 0x4 - core index']
  #allocation1 [shape = 'u32[72,128]{1,0:T(1,128)}', space=vmem, size = 0x9000, scoped, tag = 'internal scratch']
  %s0 = inlined_call_operand.hbm [shape: bf16[8,128], index: 0, kind: input, shape index: {}]
  %s1 = inlined_call_operand.hbm [shape: bf16[512,128], index: 1, kind: input, shape index: {}]
  %s2 = inlined_call_operand.hbm [shape: f32[4,128], index: 2, kind: input, shape index: {}]
  %s3 = inlined_call_operand.hbm [shape: f32[8,128], index: 3, kind: output, shape index: {0}]
  %s4 = inlined_call_operand.hbm [shape: f32[1,1,128], index: 4, kind: output, shape index: {1}]
  %5 = xla_tuple %s3, %s4
  %s6 = sld [smem:[#allocation0]]
  $region42: #{tpu_custom_call.1} parent=0
    _
  %s8 = ssub.s32 1, %s6
  %s9 = scalar_select 0, %s8, %s6
  $region1: #{tpu_custom_call.1} parent=0
    #allocation2 [shape = 'u8[2048]{0}', space=vmem, size = 0x800, scoped, tag = 'input window, operand 0, single buffered']
    #allocation3 [shape = 's32[1]{0}', space=sflag, size = 0x4, scoped, tag = 'scoped memory for tpu_custom_call.1']
    #allocation4 [shape = 's32[1]{0}', space=sflag, size = 0x4, scoped, tag = 'scoped memory for tpu_custom_call.1']
    #allocation5 [shape = 'u8[131072]{0}', space=vmem, size = 0x20000, scoped, tag = 'input window, operand 1, single buffered']
    #allocation6 [shape = 's32[1]{0}', space=sflag, size = 0x4, scoped, tag = 'scoped memory for tpu_custom_call.1']
    #allocation7 [shape = 'u8[2048]{0}', space=vmem, size = 0x800, scoped, tag = 'input window, operand 2, single buffered']
    #allocation8 [shape = 'u8[4096]{0}', space=vmem, size = 0x1000, scoped, tag = 'output window, operand 0, single buffered']
    #allocation9 [shape = 'u8[512]{0}', space=vmem, size = 0x400, scoped, tag = 'output window, operand 1, single buffered']
    #allocation10 [shape = 's32[1]{0}', space=sflag, size = 0x4, scoped, tag = 'scoped memory for tpu_custom_call.1']
    %10 = vsyncpa [#allocation3], 0
    %11 = vsyncpa [#allocation6], 0
    %12 = vsyncpa [#allocation4], 0
    %13 = vsyncpa [#allocation10], 0
    // Predicated region
    $region2: #{tpu_custom_call.1} parent=1 // pred_check
      _
    $region3: #{tpu_custom_call.1} parent=1 // pred_check_branch
      %15 = sbr.rel (0) target = $region5
    $region4: #{tpu_custom_call.1} parent=1 // pred_region
      %17 = vsyncadd [#allocation3], 0
      %s19 = sshll.u32 %s0, 4
      %s20 = int_to_ptr.hbm [resolvable:$true] %s19
      %s21 = sshll.u32 [#allocation2], 4
      %s22 = int_to_ptr.vmem [resolvable:$true] %s21
      %24 = dma.hbm_to_vmem [thread:$0]  %s20, 64, %s22, [#allocation3]
    $region5: #{tpu_custom_call.1} parent=1 // pred_fallthru
      _
    // Predicated region
    $region6: #{tpu_custom_call.1} parent=1 // pred_check
      _
    $region7: #{tpu_custom_call.1} parent=1 // pred_check_branch
      %26 = sbr.rel (0) target = $region9
    $region8: #{tpu_custom_call.1} parent=1 // pred_region
      %28 = vsyncadd [#allocation6], 0
      %s29 = sshll.u32 %s1, 4
      %s30 = int_to_ptr.hbm [resolvable:$true] %s29
      %s31 = sshll.u32 [#allocation5], 4
      %s32 = int_to_ptr.vmem [resolvable:$true] %s31
      %37 = dma.hbm_to_vmem [thread:$0]  %s30, 4096, %s32, [#allocation6], 64, 64, 4
    $region9: #{tpu_custom_call.1} parent=1 // pred_fallthru
      _
    // Predicated region
    $region10: #{tpu_custom_call.1} parent=1 // pred_check
      _
    $region11: #{tpu_custom_call.1} parent=1 // pred_check_branch
      %39 = sbr.rel (0) target = $region13
    $region12: #{tpu_custom_call.1} parent=1 // pred_region
      %41 = vsyncadd [#allocation6], 0
      %s43 = sshll.u32 %s2, 4
      %s44 = int_to_ptr.hbm [resolvable:$true] %s43
      %s45 = sshll.u32 [#allocation7], 4
      %s46 = int_to_ptr.vmem [resolvable:$true] %s45
      %48 = dma.hbm_to_vmem [thread:$0]  %s44, 64, %s46, [#allocation6]
    $region13: #{tpu_custom_call.1} parent=1 // pred_fallthru
      _
    // Predicated region
    $region14: #{tpu_custom_call.1} parent=1 // pred_check
      _
    $region15: #{tpu_custom_call.1} parent=1 // pred_check_branch
      %50 = sbr.rel (0) target = $region17
    $region16: #{tpu_custom_call.1} parent=1 // pred_region
      %52 = dma.done [#allocation3], 64
    $region17: #{tpu_custom_call.1} parent=1 // pred_fallthru
      _
    // Predicated region
    $region18: #{tpu_custom_call.1} parent=1 // pred_check
      _
    $region19: #{tpu_custom_call.1} parent=1 // pred_check_branch
      %54 = sbr.rel (0) target = $region21
    $region20: #{tpu_custom_call.1} parent=1 // pred_region
      %56 = dma.done [#allocation6], 4096
    $region21: #{tpu_custom_call.1} parent=1 // pred_fallthru
      _
    // Predicated region
    $region22: #{tpu_custom_call.1} parent=1 // pred_check
      _
    $region23: #{tpu_custom_call.1} parent=1 // pred_check_branch
      %58 = sbr.rel (0) target = $region25
    $region24: #{tpu_custom_call.1} parent=1 // pred_region
      %60 = dma.done [#allocation6], 64
    $region25: #{tpu_custom_call.1} parent=1 // pred_fallthru
      _
    %v61 = vld [vmem:[#allocation2] sm:$0xf]
    %v62 = vld [vmem:[#allocation5] sm:$0xf]
    %v63 = vld [vmem:[#allocation5 + $0x4] sm:$0xf]
    %v64 = vld [vmem:[#allocation5 + $0x8] sm:$0xf]
    %v65 = vld [vmem:[#allocation5 + $0xc] sm:$0xf]
    %v66 = vld [vmem:[#allocation5 + $0x10] sm:$0xf]
    %v67 = vld [vmem:[#allocation5 + $0x14] sm:$0xf]
    %v68 = vld [vmem:[#allocation5 + $0x18] sm:$0xf]
    %v69 = vld [vmem:[#allocation5 + $0x1c] sm:$0xf]
    %v70 = vld [vmem:[#allocation5 + $0x20] sm:$0xf]
    %v71 = vld [vmem:[#allocation5 + $0x24] sm:$0xf]
    %v72 = vld [vmem:[#allocation5 + $0x28] sm:$0xf]
    %v73 = vld [vmem:[#allocation5 + $0x2c] sm:$0xf]
    %v74 = vld [vmem:[#allocation5 + $0x30] sm:$0xf]
    %v75 = vld [vmem:[#allocation5 + $0x34] sm:$0xf]
    %v76 = vld [vmem:[#allocation5 + $0x38] sm:$0xf]
    %v77 = vld [vmem:[#allocation5 + $0x3c] sm:$0xf]
    %v78 = vld [vmem:[#allocation7] sm:$0x1]
    %v79 = vperm.slane %v78, 0
    %v96 = vunpack.c.l.b16 %v62
    %v97 = vunpack.c.l.b16 %v63
    %v98 = vunpack.c.l.b16 %v64
    %v99 = vunpack.c.l.b16 %v65
    %v100 = vunpack.c.l.b16 %v66
    %v101 = vunpack.c.l.b16 %v67
    %v102 = vunpack.c.l.b16 %v68
    %v103 = vunpack.c.l.b16 %v69
    %v104 = vunpack.c.l.b16 %v70
    %v105 = vunpack.c.l.b16 %v71
    %v106 = vunpack.c.l.b16 %v72
    %v107 = vunpack.c.l.b16 %v73
    %v108 = vunpack.c.l.b16 %v74
    %v109 = vunpack.c.l.b16 %v75
    %v110 = vunpack.c.l.b16 %v76
    %v111 = vunpack.c.l.b16 %v77
    %v112 = vpack.c.b16 %v97, %v96
    %v113 = vpack.c.b16 %v99, %v98
    %v114 = vpack.c.b16 %v101, %v100
    %v115 = vpack.c.b16 %v103, %v102
    %v116 = vpack.c.b16 %v105, %v104
    %v117 = vpack.c.b16 %v107, %v106
    %v118 = vpack.c.b16 %v109, %v108
    %v119 = vpack.c.b16 %v111, %v110
    %128 = vmatpush.bf16.msra.mxu0 %v119
    %129 = vmatpush.bf16.msra.mxu0 %v118
    %130 = vmatpush.bf16.msra.mxu0 %v117
    %131 = vmatpush.bf16.msra.mxu0 %v116
    %132 = vmatpush.bf16.msra.mxu0 %v115
    %133 = vmatpush.bf16.msra.mxu0 %v114
    %134 = vmatpush.bf16.msra.mxu0 %v113
    %135 = vmatpush.bf16.msra.mxu0 %v112
    %136 = vmatmul.bf16.gmra.mxu0 %v61
    %v137 = vpop.f32.mrf.mxu0
    %v138 = vadd.f32 %v79, %v137
    %v139 = vpop.f32.mrf.mxu0
    %140 = vdwg.mxu0
    %v141 = vmax.f32 %v138, 0.0
    %v142 = vpack.c.bf16 %v141, %v141
    %v143 = vld [vmem:[#allocation5 + $0x40] sm:$0xf]
    %v144 = vld [vmem:[#allocation5 + $0x44] sm:$0xf]
    %v145 = vld [vmem:[#allocation5 + $0x48] sm:$0xf]
    %v146 = vld [vmem:[#allocation5 + $0x4c] sm:$0xf]
    %v147 = vld [vmem:[#allocation5 + $0x50] sm:$0xf]
    %v148 = vld [vmem:[#allocation5 + $0x54] sm:$0xf]
    %v149 = vld [vmem:[#allocation5 + $0x58] sm:$0xf]
    %v150 = vld [vmem:[#allocation5 + $0x5c] sm:$0xf]
    %v151 = vld [vmem:[#allocation5 + $0x60] sm:$0xf]
    %v152 = vld [vmem:[#allocation5 + $0x64] sm:$0xf]
    %v153 = vld [vmem:[#allocation5 + $0x68] sm:$0xf]
    %v154 = vld [vmem:[#allocation5 + $0x6c] sm:$0xf]
    %v155 = vld [vmem:[#allocation5 + $0x70] sm:$0xf]
    %v156 = vld [vmem:[#allocation5 + $0x74] sm:$0xf]
    %v157 = vld [vmem:[#allocation5 + $0x78] sm:$0xf]
    %v158 = vld [vmem:[#allocation5 + $0x7c] sm:$0xf]
    %v159 = vld [vmem:[#allocation7 + $0x1] sm:$0x1]
    %v160 = vperm.slane %v159, 0
    %v177 = vunpack.c.l.b16 %v143
    %v178 = vunpack.c.l.b16 %v144
    %v179 = vunpack.c.l.b16 %v145
    %v180 = vunpack.c.l.b16 %v146
    %v181 = vunpack.c.l.b16 %v147
    %v182 = vunpack.c.l.b16 %v148
    %v183 = vunpack.c.l.b16 %v149
    %v184 = vunpack.c.l.b16 %v150
    %v185 = vunpack.c.l.b16 %v151
    %v186 = vunpack.c.l.b16 %v152
    %v187 = vunpack.c.l.b16 %v153
    %v188 = vunpack.c.l.b16 %v154
    %v189 = vunpack.c.l.b16 %v155
    %v190 = vunpack.c.l.b16 %v156
    %v191 = vunpack.c.l.b16 %v157
    %v192 = vunpack.c.l.b16 %v158
    %v193 = vpack.c.b16 %v178, %v177
    %v194 = vpack.c.b16 %v180, %v179
    %v195 = vpack.c.b16 %v182, %v181
    %v196 = vpack.c.b16 %v184, %v183
    %v197 = vpack.c.b16 %v186, %v185
    %v198 = vpack.c.b16 %v188, %v187
    %v199 = vpack.c.b16 %v190, %v189
    %v200 = vpack.c.b16 %v192, %v191
    %209 = vmatpush.bf16.msra.mxu0 %v200
    %210 = vmatpush.bf16.msra.mxu0 %v199
    %211 = vmatpush.bf16.msra.mxu0 %v198
    %212 = vmatpush.bf16.msra.mxu0 %v197
    %213 = vmatpush.bf16.msra.mxu0 %v196
    %214 = vmatpush.bf16.msra.mxu0 %v195
    %215 = vmatpush.bf16.msra.mxu0 %v194
    %216 = vmatpush.bf16.msra.mxu0 %v193
    %217 = vmatmul.bf16.gmra.mxu0 %v142
    %v218 = vpop.f32.mrf.mxu0
    %v219 = vadd.f32 %v160, %v218
    %v220 = vpop.f32.mrf.mxu0
    %221 = vdwg.mxu0
    %v222 = vmax.f32 %v219, 0.0
    %v223 = vpack.c.bf16 %v222, %v222
    %v224 = vld [vmem:[#allocation5 + $0x80] sm:$0xf]
    %v225 = vld [vmem:[#allocation5 + $0x84] sm:$0xf]
    %v226 = vld [vmem:[#allocation5 + $0x88] sm:$0xf]
    %v227 = vld [vmem:[#allocation5 + $0x8c] sm:$0xf]
    %v228 = vld [vmem:[#allocation5 + $0x90] sm:$0xf]
    %v229 = vld [vmem:[#allocation5 + $0x94] sm:$0xf]
    %v230 = vld [vmem:[#allocation5 + $0x98] sm:$0xf]
    %v231 = vld [vmem:[#allocation5 + $0x9c] sm:$0xf]
    %v232 = vld [vmem:[#allocation5 + $0xa0] sm:$0xf]
    %v233 = vld [vmem:[#allocation5 + $0xa4] sm:$0xf]
    %v234 = vld [vmem:[#allocation5 + $0xa8] sm:$0xf]
    %v235 = vld [vmem:[#allocation5 + $0xac] sm:$0xf]
    %v236 = vld [vmem:[#allocation5 + $0xb0] sm:$0xf]
    %v237 = vld [vmem:[#allocation5 + $0xb4] sm:$0xf]
    %v238 = vld [vmem:[#allocation5 + $0xb8] sm:$0xf]
    %v239 = vld [vmem:[#allocation5 + $0xbc] sm:$0xf]
    %v240 = vld [vmem:[#allocation7 + $0x2] sm:$0x1]
    %v241 = vperm.slane %v240, 0
    %v258 = vunpack.c.l.b16 %v224
    %v259 = vunpack.c.l.b16 %v225
    %v260 = vunpack.c.l.b16 %v226
    %v261 = vunpack.c.l.b16 %v227
    %v262 = vunpack.c.l.b16 %v228
    %v263 = vunpack.c.l.b16 %v229
    %v264 = vunpack.c.l.b16 %v230
    %v265 = vunpack.c.l.b16 %v231
    %v266 = vunpack.c.l.b16 %v232
    %v267 = vunpack.c.l.b16 %v233
    %v268 = vunpack.c.l.b16 %v234
    %v269 = vunpack.c.l.b16 %v235
    %v270 = vunpack.c.l.b16 %v236
    %v271 = vunpack.c.l.b16 %v237
    %v272 = vunpack.c.l.b16 %v238
    %v273 = vunpack.c.l.b16 %v239
    %v274 = vpack.c.b16 %v259, %v258
    %v275 = vpack.c.b16 %v261, %v260
    %v276 = vpack.c.b16 %v263, %v262
    %v277 = vpack.c.b16 %v265, %v264
    %v278 = vpack.c.b16 %v267, %v266
    %v279 = vpack.c.b16 %v269, %v268
    %v280 = vpack.c.b16 %v271, %v270
    %v281 = vpack.c.b16 %v273, %v272
    %290 = vmatpush.bf16.msra.mxu0 %v281
    %291 = vmatpush.bf16.msra.mxu0 %v280
    %292 = vmatpush.bf16.msra.mxu0 %v279
    %293 = vmatpush.bf16.msra.mxu0 %v278
    %294 = vmatpush.bf16.msra.mxu0 %v277
    %295 = vmatpush.bf16.msra.mxu0 %v276
    %296 = vmatpush.bf16.msra.mxu0 %v275
    %297 = vmatpush.bf16.msra.mxu0 %v274
    %298 = vmatmul.bf16.gmra.mxu0 %v223
    %v299 = vpop.f32.mrf.mxu0
    %v300 = vadd.f32 %v241, %v299
    %v301 = vpop.f32.mrf.mxu0
    %302 = vdwg.mxu0
    %v303 = vmax.f32 %v300, 0.0
    %v304 = vpack.c.bf16 %v303, %v303
    %v305 = vld [vmem:[#allocation5 + $0xc0] sm:$0xf]
    %v306 = vld [vmem:[#allocation5 + $0xc4] sm:$0xf]
    %v307 = vld [vmem:[#allocation5 + $0xc8] sm:$0xf]
    %v308 = vld [vmem:[#allocation5 + $0xcc] sm:$0xf]
    %v309 = vld [vmem:[#allocation5 + $0xd0] sm:$0xf]
    %v310 = vld [vmem:[#allocation5 + $0xd4] sm:$0xf]
    %v311 = vld [vmem:[#allocation5 + $0xd8] sm:$0xf]
    %v312 = vld [vmem:[#allocation5 + $0xdc] sm:$0xf]
    %v313 = vld [vmem:[#allocation5 + $0xe0] sm:$0xf]
    %v314 = vld [vmem:[#allocation5 + $0xe4] sm:$0xf]
    %v315 = vld [vmem:[#allocation5 + $0xe8] sm:$0xf]
    %v316 = vld [vmem:[#allocation5 + $0xec] sm:$0xf]
    %v317 = vld [vmem:[#allocation5 + $0xf0] sm:$0xf]
    %v318 = vld [vmem:[#allocation5 + $0xf4] sm:$0xf]
    %v319 = vld [vmem:[#allocation5 + $0xf8] sm:$0xf]
    %v320 = vld [vmem:[#allocation5 + $0xfc] sm:$0xf]
    %v321 = vld [vmem:[#allocation7 + $0x3] sm:$0x1]
    %v322 = vperm.slane %v321, 0
    %v339 = vunpack.c.l.b16 %v305
    %v340 = vunpack.c.l.b16 %v306
    %v341 = vunpack.c.l.b16 %v307
    %v342 = vunpack.c.l.b16 %v308
    %v343 = vunpack.c.l.b16 %v309
    %v344 = vunpack.c.l.b16 %v310
    %v345 = vunpack.c.l.b16 %v311
    %v346 = vunpack.c.l.b16 %v312
    %v347 = vunpack.c.l.b16 %v313
    %v348 = vunpack.c.l.b16 %v314
    %v349 = vunpack.c.l.b16 %v315
    %v350 = vunpack.c.l.b16 %v316
    %v351 = vunpack.c.l.b16 %v317
    %v352 = vunpack.c.l.b16 %v318
    %v353 = vunpack.c.l.b16 %v319
    %v354 = vunpack.c.l.b16 %v320
    %v355 = vpack.c.b16 %v340, %v339
    %v356 = vpack.c.b16 %v342, %v341
    %v357 = vpack.c.b16 %v344, %v343
    %v358 = vpack.c.b16 %v346, %v345
    %v359 = vpack.c.b16 %v348, %v347
    %v360 = vpack.c.b16 %v350, %v349
    %v361 = vpack.c.b16 %v352, %v351
    %v362 = vpack.c.b16 %v354, %v353
    %371 = vmatpush.bf16.msra.mxu0 %v362
    %372 = vmatpush.bf16.msra.mxu0 %v361
    %373 = vmatpush.bf16.msra.mxu0 %v360
    %374 = vmatpush.bf16.msra.mxu0 %v359
    %375 = vmatpush.bf16.msra.mxu0 %v358
    %376 = vmatpush.bf16.msra.mxu0 %v357
    %377 = vmatpush.bf16.msra.mxu0 %v356
    %378 = vmatpush.bf16.msra.mxu0 %v355
    %379 = vmatmul.bf16.gmra.mxu0 %v304
    %v380 = vpop.f32.mrf.mxu0
    %v381 = vadd.f32 %v322, %v380
    %v382 = vpop.f32.mrf.mxu0
    %383 = vdwg.mxu0
    %385 = vset.pattern.permute.xlu0 0
    %386 = vperm.xlu0 %385, %v381
    %v387 = vpop.permute.xlu0 %386
    %v389 = vadd.f32 %v381, %v387
    %390 = vst [vmem:[#allocation8] sm:$0xff] %v389
    %s391 = smul.u32 0, 8
    %v392 = vlaneseq
    %v393 = vshrl.u32 %v392, 7
    %v394 = vstv %s391
    %v395 = vadd.s32 %v394, %v393
    %vm396 = vcmp.lt.s32.totalorder %v395, 2
    %v397 = vsel %vm396, 1, 0
    %v398 = vcvt.s32.f32 %v397
    %v399 = vmul.f32 %v381, %v398
    %v400 = vrot.slane %v399, 4
    %v401 = vadd.f32 %v399, %v400
    %v402 = vrot.slane %v401, 2
    %v403 = vadd.f32 %v401, %v402
    %v404 = vrot.slane %v403, 1
    %v405 = vadd.f32 %v403, %v404
    %406 = vst [vmem:[#allocation9] sm:$0x1] %v405
    // Predicated region
    $region26: #{tpu_custom_call.1} parent=1 // pred_check
      _
    $region27: #{tpu_custom_call.1} parent=1 // pred_check_branch
      %408 = sbr.rel (0) target = $region29
    $region28: #{tpu_custom_call.1} parent=1 // pred_region
      %410 = vsyncadd [#allocation4], 0
      %s412 = sshll.u32 [#allocation8], 4
      %s413 = int_to_ptr.vmem [resolvable:$true] %s412
      %s414 = sshll.u32 %s3, 4
      %s415 = int_to_ptr.hbm [resolvable:$true] %s414
      %417 = dma.vmem_to_hbm [thread:$0]  %s413, 128, %s415, [#allocation4]
    $region29: #{tpu_custom_call.1} parent=1 // pred_fallthru
      _
    // Predicated region
    $region30: #{tpu_custom_call.1} parent=1 // pred_check
      _
    $region31: #{tpu_custom_call.1} parent=1 // pred_check_branch
      %419 = sbr.rel (0) target = $region33
    $region32: #{tpu_custom_call.1} parent=1 // pred_region
      %421 = vsyncadd [#allocation10], 0
      %s423 = sshll.u32 [#allocation9], 4
      %s424 = int_to_ptr.vmem [resolvable:$true] %s423
      %s425 = sshll.u32 %s4, 4
      %s426 = int_to_ptr.hbm [resolvable:$true] %s425
      %428 = dma.vmem_to_hbm [thread:$0]  %s424, 16, %s426, [#allocation10]
    $region33: #{tpu_custom_call.1} parent=1 // pred_fallthru
      _
    // Predicated region
    $region34: #{tpu_custom_call.1} parent=1 // pred_check
      _
    $region35: #{tpu_custom_call.1} parent=1 // pred_check_branch
      %430 = sbr.rel (0) target = $region37
    $region36: #{tpu_custom_call.1} parent=1 // pred_region
      %432 = dma.done [#allocation4], 128
    $region37: #{tpu_custom_call.1} parent=1 // pred_fallthru
      _
    // Predicated region
    $region38: #{tpu_custom_call.1} parent=1 // pred_check
      _
    $region39: #{tpu_custom_call.1} parent=1 // pred_check_branch
      %434 = sbr.rel (0) target = $region41
    $region40: #{tpu_custom_call.1} parent=1 // pred_region
      %436 = dma.done [#allocation10], 16
    $region41: #{tpu_custom_call.1} parent=1 // pred_fallthru
      _
    %437 = vsyncpa [#allocation3], 1
    %438 = vsyncpa [#allocation6], 1
    %439 = vsyncpa [#allocation4], 1
    %440 = vsyncpa [#allocation10], 1

</llo_original>
